<compile_context>
chip_gen: v7x
topology: tpu7x:2x2x1
jax: 0.10.0
libtpu: 0.0.40
codegen_flags: <defaults>
</compile_context>

<pallas_src>
import jax
import jax.numpy as jnp
from jax.experimental import pallas as pl
from jax.experimental.pallas import tpu as pltpu

OUT_PAD = 128           # lane-dense output width (real outputs in columns 0..1)
_MiB = 1024 * 1024


# --------------------------------------------------------------------------- #
# Kernel
# --------------------------------------------------------------------------- #
def _linear_sigmoid_kernel(x_ref, w_ref, b_ref, o_ref):
    # x_ref: [block_b, D] f32 ; w_ref: [D, OUT_PAD] f32 (col0 = -W, col1 = +W)
    # b_ref: [1, OUT_PAD] f32 ; o_ref: [block_b, OUT_PAD] bf16
    z = jnp.dot(x_ref[...], w_ref[...], preferred_element_type=jnp.float32)
    z = z + b_ref[...]
    # sigmoid(z) = 0.5 * (tanh(z/2) + 1): one EUP push per element and the two
    # signed columns produce exactly complementary probabilities.
    p = 0.5 * (jnp.tanh(0.5 * z) + 1.0)
    o_ref[...] = p.astype(o_ref.dtype)      # full 128-lane (unmasked) store


# --------------------------------------------------------------------------- #
# One-time parameter packing (sklearn fit-time state)
# --------------------------------------------------------------------------- #
def pack_linear_classifier_params(W, b):
    """W: [D, 1] (coef_.T), b: [1]. Returns (w_pad [D,128] f32, b_pad [1,128] f32).

    col0 = -W / -b  (sigmoid(-z) = 1 - p),  col1 = +W / +b  (sigmoid(z) = p),
    remaining 126 lanes are zero padding (sliced off after the kernel).
    """
    w_col = jnp.asarray(W, jnp.float32).reshape(-1, 1)            # [D, 1]
    b_val = jnp.asarray(b, jnp.float32).reshape(1, 1)             # [1, 1]
    w_signed = jnp.concatenate([-w_col, w_col], axis=1)           # [D, 2]
    b_signed = jnp.concatenate([-b_val, b_val], axis=1)           # [1, 2]
    w_pad = jnp.pad(w_signed, ((0, 0), (0, OUT_PAD - 2)))         # [D, 128]
    b_pad = jnp.pad(b_signed, ((0, 0), (0, OUT_PAD - 2)))         # [1, 128]
    return w_pad, b_pad


# --------------------------------------------------------------------------- #
# Tiling / VMEM heuristics
# --------------------------------------------------------------------------- #
def _tpu_vmem_capacity_bytes():
    try:
        return int(pltpu.get_tpu_info().vmem_capacity_bytes)
    except Exception:
        return 64 * _MiB        # conservative (v7x per-TensorCore)


def _vmem_estimate_bytes(block_b, D):
    x_bytes = 2 * block_b * D * 4          # f32 x tile, double-buffered
    w_bytes = 2 * D * OUT_PAD * 4          # f32 signed/padded W (replicated)
    b_bytes = 2 * 8 * OUT_PAD * 4          # f32 bias tile (padded to 8 sublanes)
    o_bytes = 2 * block_b * OUT_PAD * 2    # bf16 out slab, double-buffered
    return x_bytes + w_bytes + b_bytes + o_bytes


def _pick_block_b(B, D, vmem_budget):
    # Largest power-of-two tile that (a) fits the double-buffered working set
    # in the per-generation VMEM budget and (b) leaves >= 4 grid steps
    # (2 per core on v7x's dual TensorCores) when the batch allows it.
    # Candidates are multiples of 16 (bf16 output sublane packing).
    for c in (2048, 1024, 512, 256, 128, 64, 32, 16):
        if _vmem_estimate_bytes(c, D) > vmem_budget:
            continue
        if pl.cdiv(B, c) >= 4 or c == 16:
            return c
    return 16


# --------------------------------------------------------------------------- #
# Forward
# --------------------------------------------------------------------------- #
def linear_classifier_forward(x, w_pad, b_pad, *, block_b=None, min_pallas_rows=1024):
    """x: [B, D]; (w_pad, b_pad) from pack_linear_classifier_params.

    Returns [B, 2] f32 probabilities [1-p, p], matching the PyTorch module.
    """
    x = x.astype(jnp.float32)              # module does x.float()
    B, D = x.shape

    # Small-batch gate: pallas_call fixed overhead dominates below ~1k rows;
    # let XLA fuse the whole thing into one pass instead.
    if B < min_pallas_rows:
        pred = x @ w_pad[:, 1:2] + b_pad[0, 1]
        p = jax.nn.sigmoid(pred)
        return jnp.concatenate([1.0 - p, p], axis=1)

    vmem_cap = _tpu_vmem_capacity_bytes()
    vmem_budget = max(16 * _MiB, (vmem_cap * 2) // 5)   # ~25 MiB v7x / ~51 MiB v5e-v6e
    vmem_limit = max(32 * _MiB, vmem_cap // 2)

    if block_b is None:
        block_b = _pick_block_b(B, D, vmem_budget)
    assert block_b % 16 == 0, "block_b must be a multiple of 16 (bf16 output tile)"

    # Pad the batch up to a multiple of block_b (padded rows are zeros; their
    # garbage probabilities are sliced off below). No whole-array fallback.
    num_blocks = pl.cdiv(B, block_b)
    B_pad = num_blocks * block_b
    if B_pad != B:
        x = jnp.pad(x, ((0, B_pad - B), (0, 0)))
    grid = (num_blocks,)

    probs_pad = pl.pallas_call(
        _linear_sigmoid_kernel,
        out_shape=jax.ShapeDtypeStruct((B_pad, OUT_PAD), jnp.bfloat16),
        grid_spec=pltpu.PrefetchScalarGridSpec(
            num_scalar_prefetch=0,
            grid=grid,
            in_specs=[
                pl.BlockSpec((block_b, D), lambda i: (i, 0)),     # x tile over batch
                pl.BlockSpec((D, OUT_PAD), lambda i: (0, 0)),     # signed/padded W
                pl.BlockSpec((1, OUT_PAD), lambda i: (0, 0)),     # signed/padded b
            ],
            out_specs=pl.BlockSpec((block_b, OUT_PAD), lambda i: (i, 0)),
        ),
        compiler_params=pltpu.CompilerParams(
            dimension_semantics=("parallel",),
            vmem_limit_bytes=vmem_limit,
        ),
    )(x, w_pad, b_pad)

    # Slice off padding rows / lanes, upcast to the module's f32 output dtype.
    return probs_pad[:B, :2].astype(jnp.float32)


# --------------------------------------------------------------------------- #
# Demo / self-test
# --------------------------------------------------------------------------- #
if __name__ == "__main__":
    # Shapes consistent with the module: x [B, D], W [D, 1], b [1].
    # B=256 keeps the demo small while still giving the grid 4 steps
    # (block_b=64 -> 2 pipelined steps per v7x TensorCore).
    B, D = 256, 128

    key = jax.random.PRNGKey(0)
    kx, kw, kb = jax.random.split(key, 3)
    x = jax.random.normal(kx, (B, D), dtype=jnp.float32)
    # Stand-in for sklearn clf.coef_.T / clf.intercept_ (binary classifier).
    W = jax.random.normal(kw, (D, 1), dtype=jnp.float32) * 0.1
    b = jax.random.normal(kb, (1,), dtype=jnp.float32)

    # One-time packing (fit-time state), reused across forward calls.
    w_pad, b_pad = pack_linear_classifier_params(W, b)
    w_pad, b_pad = jax.block_until_ready((w_pad, b_pad))

    # Pure-JAX reference with the module's exact f32 semantics.
    pred = x @ W + b
    p = jax.nn.sigmoid(pred)
    ref = jnp.concatenate([1.0 - p, p], axis=1)

    # 1) Pallas path (min_pallas_rows=0 forces the kernel at this demo size).
    probs = linear_classifier_forward(x, w_pad, b_pad, min_pallas_rows=0)
    probs = jax.block_until_ready(probs)
    assert probs.shape == (B, 2)
    # f32 compute + exact sigmoid; only the bf16 output store adds error (~4e-3).
    assert jnp.allclose(probs, ref, atol=1e-2, rtol=1e-2), float(jnp.max(jnp.abs(probs - ref)))
    assert jnp.allclose(jnp.sum(probs, axis=-1), 1.0, atol=1e-2)

    # 2) Small-batch fallback path (fused jnp expression) — exact parity.
    probs_fb = linear_classifier_forward(x, w_pad, b_pad)   # B < default threshold
    probs_fb = jax.block_until_ready(probs_fb)
    assert jnp.allclose(probs_fb, ref, atol=1e-6, rtol=1e-6)

    print("KERNEL_OK")
</pallas_src>

<mosaic_0001>
module attributes {stable_mosaic.version = 11 : i64} {
  func.func @_linear_sigmoid_kernel(%arg0: i32, %arg1: memref<64x128xf32, #tpu.memory_space<vmem>>, %arg2: memref<128x128xf32, #tpu.memory_space<vmem>>, %arg3: memref<1x128xf32, #tpu.memory_space<vmem>>, %arg4: memref<64x128xbf16, #tpu.memory_space<vmem>>) attributes {dimension_semantics = [#tpu.dimension_semantics<parallel>], iteration_bounds = array<i64: 4>, scalar_prefetch = 0 : i64, scratch_operands = 0 : i64, tpu.core_type = #tpu.core_type<tc>, window_params = [{transform_indices = @transform_0, window_bounds = array<i64: 64, 128>}, {pipeline_mode = #tpu.pipeline_mode<synchronous>, transform_indices = @transform_1, window_bounds = array<i64: 128, 128>}, {pipeline_mode = #tpu.pipeline_mode<synchronous>, transform_indices = @transform_2, window_bounds = array<i64: 1, 128>}, {transform_indices = @transform_3, window_bounds = array<i64: 64, 128>}]} {
    %c0 = arith.constant 0 : index
    %c0_0 = arith.constant 0 : index
    %0 = vector.load %arg1[%c0, %c0_0] : memref<64x128xf32, #tpu.memory_space<vmem>>, vector<64x128xf32>
    %c0_1 = arith.constant 0 : index
    %c0_2 = arith.constant 0 : index
    %1 = vector.load %arg2[%c0_1, %c0_2] : memref<128x128xf32, #tpu.memory_space<vmem>>, vector<128x128xf32>
    %cst = arith.constant dense<0.000000e+00> : vector<64x128xf32>
    %2 = tpu.matmul %0, %1, %cst {dimension_numbers = #tpu.dot_dimension_numbers<[1], [0], [0], [1], [0, 0, 1, 1], [], []>} : vector<64x128xf32>, vector<128x128xf32>, vector<64x128xf32> -> vector<64x128xf32>
    %c0_3 = arith.constant 0 : index
    %c0_4 = arith.constant 0 : index
    %3 = vector.load %arg3[%c0_3, %c0_4] : memref<1x128xf32, #tpu.memory_space<vmem>>, vector<1x128xf32>
    %4 = vector.broadcast %3 : vector<1x128xf32> to vector<64x128xf32>
    %5 = arith.addf %2, %4 : vector<64x128xf32>
    %cst_5 = arith.constant 5.000000e-01 : f32
    %6 = vector.broadcast %cst_5 : f32 to vector<64x128xf32>
    %7 = arith.mulf %6, %5 : vector<64x128xf32>
    %8 = math.tanh %7 : vector<64x128xf32>
    %cst_6 = arith.constant 1.000000e+00 : f32
    %9 = vector.broadcast %cst_6 : f32 to vector<64x128xf32>
    %10 = arith.addf %8, %9 : vector<64x128xf32>
    %cst_7 = arith.constant 5.000000e-01 : f32
    %11 = vector.broadcast %cst_7 : f32 to vector<64x128xf32>
    %12 = arith.mulf %11, %10 : vector<64x128xf32>
    %13 = arith.truncf %12 : vector<64x128xf32> to vector<64x128xbf16>
    %c0_8 = arith.constant 0 : index
    %c0_9 = arith.constant 0 : index
    %14 = vector.load %arg4[%c0_8, %c0_9] : memref<64x128xbf16, #tpu.memory_space<vmem>>, vector<64x128xbf16>
    tpu.vector_store %arg4[%c0_8, %c0_9], %13 {strides = array<i32>} : memref<64x128xbf16, #tpu.memory_space<vmem>>, vector<64x128xbf16>,
    return
  }
  func.func @transform_0(%arg0: i32) -> (i32, i32) {
    %c0_i32 = arith.constant 0 : i32
    %c0_i32_0 = arith.constant 0 : i32
    return %arg0, %c0_i32 : i32, i32
  }
  func.func @transform_1(%arg0: i32) -> (i32, i32) {
    %c0_i32 = arith.constant 0 : i32
    %c0_i32_0 = arith.constant 0 : i32
    %c0_i32_1 = arith.constant 0 : i32
    return %c0_i32, %c0_i32_0 : i32, i32
  }
  func.func @transform_2(%arg0: i32) -> (i32, i32) {
    %c0_i32 = arith.constant 0 : i32
    %c0_i32_0 = arith.constant 0 : i32
    %c0_i32_1 = arith.constant 0 : i32
    return %c0_i32, %c0_i32_0 : i32, i32
  }
  func.func @transform_3(%arg0: i32) -> (i32, i32) {
    %c0_i32 = arith.constant 0 : i32
    %c0_i32_0 = arith.constant 0 : i32
    return %arg0, %c0_i32 : i32, i32
  }
}

</mosaic_0001>

<llo_original>
// kernel: tpu_custom_call.1
$region0: #{tpu_custom_call.1}
  #allocation0 [shape = 'u32[]', space=smem, size = 0x4, offset = 0x4, fixed_abs, tag = 'smem constant byte address 0x4 - core index']
  #allocation1 [shape = 'u32[144,128]{1,0:T(1,128)}', space=vmem, size = 0x12000, scoped, tag = 'internal scratch']
  %s0 = inlined_call_operand.hbm [shape: f32[256,128], index: 0, kind: input, shape index: {}]
  %s1 = inlined_call_operand.hbm [shape: f32[128,128], index: 1, kind: input, shape index: {}]
  %s2 = inlined_call_operand.vmem [shape: f32[1,128], index: 2, kind: input, shape index: {}]
  %s3 = inlined_call_operand.hbm [shape: bf16[256,128], index: 3, kind: output, shape index: {}]
  %s4 = sld [smem:[#allocation0]]
  $region53: #{tpu_custom_call.1} parent=0
    _
  %s6 = ssub.s32 1, %s4
  %s7 = scalar_select 0, %s6, %s4
  $region1: #{tpu_custom_call.1} parent=0
    #allocation2 [shape = 'u8[65536]{0}', space=vmem, size = 0x10000, scoped, tag = 'input window, operand 0']
    #allocation3 [shape = 's32[2]{0}', space=sflag, size = 0x8, scoped, tag = 'scoped memory for tpu_custom_call.1']
    #allocation4 [shape = 's32[2]{0}', space=sflag, size = 0x8, scoped, tag = 'scoped memory for tpu_custom_call.1']
    #allocation5 [shape = 'u8[65536]{0}', space=vmem, size = 0x10000, scoped, tag = 'input window, operand 1, single buffered']
    #allocation6 [shape = 's32[1]{0}', space=sflag, size = 0x4, scoped, tag = 'scoped memory for tpu_custom_call.1']
    #allocation7 [shape = 'u8[32768]{0}', space=vmem, size = 0x8000, scoped, tag = 'output window, operand 0']
    %8 = vsyncpa [#allocation3], 0
    %s9 = scalar_lea.sflag [#allocation3], 1
    %10 = vsyncpa %s9, 0
    %11 = vsyncpa [#allocation6], 0
    %12 = vsyncpa [#allocation4], 0
    %s13 = scalar_lea.sflag [#allocation4], 1
    %14 = vsyncpa %s13, 0
    loop: start=0, step=1, limit=6
    $region2: #{tpu_custom_call.1} parent=1 // loop_pre_header
      _
    $region3: #{tpu_custom_call.1} parent=1 // loop_header
      %s16 = sphi 0, %s20
      %p17 = scmp.ge.s32.totalorder %s16, 6
      %s26 = sphi 0, %s28
      %s29 = sphi 0, %s26
      %s30 = sphi 0, %s29
      %s46 = sphi 0, %s30
      %s50 = sphi 0, %s50
      %s52 = sphi 0, %s50
      %s53 = sphi 0, %s52
      %s67 = sphi 0, %s53
      %s71 = sphi 0, %s71
      %s73 = sphi 0, %s71
      %s74 = sphi 0, %s73
      %s88 = sphi 0, %s74
      %s94 = sphi 0, %s96
      %s97 = sphi 0, %s94
      %s98 = sphi 0, %s97
      %s114 = sphi 0, %s98
    $region4: #{tpu_custom_call.1} parent=1 // loop_header_branch
      %19 = sbr.rel (%p17) target = $region8
    $region5: #{tpu_custom_call.1} parent=1 // loop_body
      %s21 = ssub.s32 %s16, 1
      %s22 = ssub.s32 %s16, 2
      %s23 = sadd.s32 %s16, 1
      %s24 = ssub.s32 %s16, %s23
      %p25 = scmp.eq.s32.totalorder %s24, 0
      %s27 = sadd.s32 %s26, 1
      %s28 = scalar_select %p25, %s26, %s27
      %p31 = pneg %p25
      %p32 = scmp.eq.s32.totalorder %s16, 3
      %p33 = por %p31, %p32
      %p34 = scmp.ne.s32.totalorder %s26, %s29
      %p35 = scmp.eq.s32.totalorder %s16, 0
      %p36 = por %p34, %p35
      %p37 = scmp.ne.s32.totalorder %s26, %s29
      %p38 = scmp.eq.s32.totalorder %s21, 3
      %p39 = por %p37, %p38
      %p40 = scmp.ne.s32.totalorder %s29, %s30
      %p41 = scmp.eq.s32.totalorder %s21, 0
      %p42 = por %p40, %p41
      %p43 = scmp.ne.s32.totalorder %s29, %s30
      %p44 = scmp.eq.s32.totalorder %s22, 3
      %p45 = por %p43, %p44
      %p47 = scmp.ne.s32.totalorder %s30, %s46
      %p48 = scmp.eq.s32.totalorder %s22, 0
      %p49 = por %p47, %p48
      %s51 = sadd.s32 %s50, 1
      %p54 = scmp.eq.s32.totalorder %s16, 3
      %p55 = scmp.ne.s32.totalorder %s50, %s52
      %p56 = scmp.eq.s32.totalorder %s16, 0
      %p57 = por %p55, %p56
      %p58 = scmp.ne.s32.totalorder %s50, %s52
      %p59 = scmp.eq.s32.totalorder %s21, 3
      %p60 = por %p58, %p59
      %p61 = scmp.ne.s32.totalorder %s52, %s53
      %p62 = scmp.eq.s32.totalorder %s21, 0
      %p63 = por %p61, %p62
      %p64 = scmp.ne.s32.totalorder %s52, %s53
      %p65 = scmp.eq.s32.totalorder %s22, 3
      %p66 = por %p64, %p65
      %p68 = scmp.ne.s32.totalorder %s53, %s67
      %p69 = scmp.eq.s32.totalorder %s22, 0
      %p70 = por %p68, %p69
      %s72 = sadd.s32 %s71, 1
      %p75 = scmp.eq.s32.totalorder %s16, 3
      %p76 = scmp.ne.s32.totalorder %s71, %s73
      %p77 = scmp.eq.s32.totalorder %s16, 0
      %p78 = por %p76, %p77
      %p79 = scmp.ne.s32.totalorder %s71, %s73
      %p80 = scmp.eq.s32.totalorder %s21, 3
      %p81 = por %p79, %p80
      %p82 = scmp.ne.s32.totalorder %s73, %s74
      %p83 = scmp.eq.s32.totalorder %s21, 0
      %p84 = por %p82, %p83
      %p85 = scmp.ne.s32.totalorder %s73, %s74
      %p86 = scmp.eq.s32.totalorder %s22, 3
      %p87 = por %p85, %p86
      %p89 = scmp.ne.s32.totalorder %s74, %s88
      %p90 = scmp.eq.s32.totalorder %s22, 0
      %p91 = por %p89, %p90
      %s92 = ssub.s32 %s16, %s23
      %p93 = scmp.eq.s32.totalorder %s92, 0
      %s95 = sadd.s32 %s94, 1
      %s96 = scalar_select %p93, %s94, %s95
      %p99 = pneg %p93
      %p100 = scmp.eq.s32.totalorder %s16, 3
      %p101 = por %p99, %p100
      %p102 = scmp.ne.s32.totalorder %s94, %s97
      %p103 = scmp.eq.s32.totalorder %s16, 0
      %p104 = por %p102, %p103
      %p105 = scmp.ne.s32.totalorder %s94, %s97
      %p106 = scmp.eq.s32.totalorder %s21, 3
      %p107 = por %p105, %p106
      %p108 = scmp.ne.s32.totalorder %s97, %s98
      %p109 = scmp.eq.s32.totalorder %s21, 0
      %p110 = por %p108, %p109
      %p111 = scmp.ne.s32.totalorder %s97, %s98
      %p112 = scmp.eq.s32.totalorder %s22, 3
      %p113 = por %p111, %p112
      %p115 = scmp.ne.s32.totalorder %s98, %s114
      %p116 = scmp.eq.s32.totalorder %s22, 0
      %p117 = por %p115, %p116
      %p118 = scmp.le.s32.totalorder 1, %s16
      %p119 = scmp.lt.s32.totalorder %s16, 5
      %p120 = pnand %p118, %p119
      %p121 = pneg %p120
      // Predicated region
      $region9: #{tpu_custom_call.1} parent=5 // pred_check
        _
      $region10: #{tpu_custom_call.1} parent=5 // pred_check_branch
        %123 = sbr.rel (%p120) target = $region12
      $region11: #{tpu_custom_call.1} parent=5 // pred_region
        %s124 = ssub.s32 %s16, 1
        // Predicated region
        $region13: #{tpu_custom_call.1} parent=11 // pred_check
          %p125 = pneg %p63
        $region14: #{tpu_custom_call.1} parent=11 // pred_check_branch
          %127 = sbr.rel (%p125) target = $region16
        $region15: #{tpu_custom_call.1} parent=11 // pred_region
          %s129 = ssub.s32 2048, 2048
          %130 = vsyncadd [#allocation6], %s129
          %s131 = sshll.u32 [#allocation5], 4
          %s132 = int_to_ptr.vmem [resolvable:$true] %s131
          %137 = dma.hbm_to_vmem [thread:$0]  %s1, 2048, %s132, [#allocation6], 128, 128, 8
        $region16: #{tpu_custom_call.1} parent=11 // pred_fallthru
          _
        // Predicated region
        $region17: #{tpu_custom_call.1} parent=11 // pred_check
          %p138 = pneg %p84
        $region18: #{tpu_custom_call.1} parent=11 // pred_check_branch
          %140 = sbr.rel (%p138) target = $region20
        $region19: #{tpu_custom_call.1} parent=11 // pred_region
          _
        $region20: #{tpu_custom_call.1} parent=11 // pred_fallthru
          _
      $region12: #{tpu_custom_call.1} parent=5 // pred_fallthru
        _
      %p141 = scmp.lt.s32.totalorder %s16, 4
      // Predicated region
      $region21: #{tpu_custom_call.1} parent=5 // pred_check
        %p142 = pneg %p141
      $region22: #{tpu_custom_call.1} parent=5 // pred_check_branch
        %144 = sbr.rel (%p142) target = $region24
      $region23: #{tpu_custom_call.1} parent=5 // pred_region
        // Predicated region
        $region25: #{tpu_custom_call.1} parent=23 // pred_check
          %p145 = pneg %p36
        $region26: #{tpu_custom_call.1} parent=23 // pred_check_branch
          %147 = sbr.rel (%p145) target = $region28
        $region27: #{tpu_custom_call.1} parent=23 // pred_region
          %s148 = sand.u32 %s26, 1
          %s149 = scalar_lea.sflag [#allocation3], %s148
          %s150 = sand.u32 %s26, 1
          %s151 = smul.addr %s150, 64
          %s152 = scalar_lea.vmem [#allocation2], %s151
          %s153 = smul.u32 8, %s16
          %s155 = ssub.s32 1024, 1024
          %156 = vsyncadd %s149, %s155
          %s157 = smul.addr %s153, 128
          %s158 = scalar_lea.hbm %s0, %s157
          %s159 = sshll.u32 %s152, 4
          %s160 = int_to_ptr.vmem [resolvable:$true] %s159
          %165 = dma.hbm_to_vmem [thread:$0]  %s158, 1024, %s160, %s149, 128, 128, 8
        $region28: #{tpu_custom_call.1} parent=23 // pred_fallthru
          _
      $region24: #{tpu_custom_call.1} parent=5 // pred_fallthru
        _
      %p166 = scmp.le.s32.totalorder 1, %s16
      %p167 = scmp.lt.s32.totalorder %s16, 5
      %p168 = pnand %p166, %p167
      %p169 = pneg %p168
      // Predicated region
      $region29: #{tpu_custom_call.1} parent=5 // pred_check
        _
      $region30: #{tpu_custom_call.1} parent=5 // pred_check_branch
        %171 = sbr.rel (%p168) target = $region32
      $region31: #{tpu_custom_call.1} parent=5 // pred_region
        %s172 = ssub.s32 %s16, 1
        %s173 = sand.u32 %s29, 1
        %s174 = scalar_lea.sflag [#allocation3], %s173
        %s175 = sand.u32 %s29, 1
        %s176 = smul.addr %s175, 64
        %s177 = scalar_lea.vmem [#allocation2], %s176
        // Predicated region
        $region33: #{tpu_custom_call.1} parent=31 // pred_check
          %p178 = pneg %p42
        $region34: #{tpu_custom_call.1} parent=31 // pred_check_branch
          %180 = sbr.rel (%p178) target = $region36
        $region35: #{tpu_custom_call.1} parent=31 // pred_region
          %181 = dma.done %s174, 1024
        $region36: #{tpu_custom_call.1} parent=31 // pred_fallthru
          _
        // Predicated region
        $region37: #{tpu_custom_call.1} parent=31 // pred_check
          %p182 = pneg %p63
        $region38: #{tpu_custom_call.1} parent=31 // pred_check_branch
          %184 = sbr.rel (%p182) target = $region40
        $region39: #{tpu_custom_call.1} parent=31 // pred_region
          %185 = dma.done [#allocation6], 2048
        $region40: #{tpu_custom_call.1} parent=31 // pred_fallthru
          _
        %s186 = sand.u32 %s29, 1
        %s187 = scalar_lea.sflag [#allocation3], %s186
        %s188 = sand.u32 %s29, 1
        %s189 = smul.addr %s188, 64
        %s190 = scalar_lea.vmem [#allocation2], %s189
        %p191 = pneg %p42
        %p192 = pneg %p39
        %p193 = pneg %p63
        %p194 = pneg %p60
        %p195 = pneg %p84
        %p196 = pneg %p81
        %p197 = pneg %p110
        %p198 = pneg %p107
        %s199 = sand.u32 %s97, 1
        %s200 = scalar_lea.sflag [#allocation4], %s199
        %s201 = sand.u32 %s97, 1
        %s202 = smul.addr %s201, 32
        %s203 = scalar_lea.vmem [#allocation7], %s202
        %s204 = smul.u32 8, %s21
        %s205 = smul.u32 8, %s21
        %v206 = vld [vmem:[%s177] sm:$0xff]
        %v207 = vld [vmem:[%s177 + $0x8] sm:$0xff]
        %v208 = vld [vmem:[%s177 + $0x10] sm:$0xff]
        %v209 = vld [vmem:[%s177 + $0x18] sm:$0xff]
        %v210 = vld [vmem:[%s177 + $0x20] sm:$0xff]
        %v211 = vld [vmem:[%s177 + $0x28] sm:$0xff]
        %v212 = vld [vmem:[%s177 + $0x30] sm:$0xff]
        %v213 = vld [vmem:[%s177 + $0x38] sm:$0xff]
        %v214 = vld [vmem:[#allocation5] sm:$0xff]
        %v215 = vld [vmem:[#allocation5 + $0x8] sm:$0xff]
        %v216 = vld [vmem:[#allocation5 + $0x10] sm:$0xff]
        %v217 = vld [vmem:[#allocation5 + $0x18] sm:$0xff]
        %v218 = vld [vmem:[#allocation5 + $0x20] sm:$0xff]
        %v219 = vld [vmem:[#allocation5 + $0x28] sm:$0xff]
        %v220 = vld [vmem:[#allocation5 + $0x30] sm:$0xff]
        %v221 = vld [vmem:[#allocation5 + $0x38] sm:$0xff]
        %v222 = vld [vmem:[#allocation5 + $0x40] sm:$0xff]
        %v223 = vld [vmem:[#allocation5 + $0x48] sm:$0xff]
        %v224 = vld [vmem:[#allocation5 + $0x50] sm:$0xff]
        %v225 = vld [vmem:[#allocation5 + $0x58] sm:$0xff]
        %v226 = vld [vmem:[#allocation5 + $0x60] sm:$0xff]
        %v227 = vld [vmem:[#allocation5 + $0x68] sm:$0xff]
        %v228 = vld [vmem:[#allocation5 + $0x70] sm:$0xff]
        %v229 = vld [vmem:[#allocation5 + $0x78] sm:$0xff]
        %v230 = vld [vmem:[%s2] sm:$0x1]
        %v232 = vlaneseq
        %v233 = vshrl.u32 %v232, 7
        %v234 = vsub.s32 0, %v233
        %v235 = vrot.slane %v230, %v234
        %237 = vmatprep.subr.mxu0 0.0
        %238 = vmatpush1.msra.mxu0 %v214
        %239 = vmatprep.subr.mxu0 0.0
        %240 = vmatpush1.msra.mxu0 %v215
        %241 = vmatprep.subr.mxu0 0.0
        %242 = vmatpush1.msra.mxu0 %v216
        %243 = vmatprep.subr.mxu0 0.0
        %244 = vmatpush1.msra.mxu0 %v217
        %245 = vmatprep.subr.mxu0 0.0
        %246 = vmatpush1.msra.mxu0 %v218
        %247 = vmatprep.subr.mxu0 0.0
        %248 = vmatpush1.msra.mxu0 %v219
        %249 = vmatprep.subr.mxu0 0.0
        %250 = vmatpush1.msra.mxu0 %v220
        %251 = vmatprep.subr.mxu0 0.0
        %252 = vmatpush1.msra.mxu0 %v221
        %253 = vmatprep.subr.mxu0 0.0
        %254 = vmatpush1.msra.mxu0 %v222
        %255 = vmatprep.subr.mxu0 0.0
        %256 = vmatpush1.msra.mxu0 %v223
        %257 = vmatprep.subr.mxu0 0.0
        %258 = vmatpush1.msra.mxu0 %v224
        %259 = vmatprep.subr.mxu0 0.0
        %260 = vmatpush1.msra.mxu0 %v225
        %261 = vmatprep.subr.mxu0 0.0
        %262 = vmatpush1.msra.mxu0 %v226
        %263 = vmatprep.subr.mxu0 0.0
        %264 = vmatpush1.msra.mxu0 %v227
        %265 = vmatprep.subr.mxu0 0.0
        %266 = vmatpush1.msra.mxu0 %v228
        %267 = vmatprep.subr.mxu0 0.0
        %268 = vmatpush1.msra.mxu0 %v229
        %269 = vmatprep.subr.mxu0 0.0
        %270 = vmatpush1.msra.mxu0 0.0
        %271 = vmatprep.subr.mxu0 0.0
        %272 = vmatpush1.msra.mxu0 0.0
        %273 = vmatprep.subr.mxu0 0.0
        %274 = vmatpush1.msra.mxu0 0.0
        %275 = vmatprep.subr.mxu0 0.0
        %276 = vmatpush1.msra.mxu0 0.0
        %277 = vmatprep.subr.mxu0 0.0
        %278 = vmatpush1.msra.mxu0 0.0
        %279 = vmatprep.subr.mxu0 0.0
        %280 = vmatpush1.msra.mxu0 0.0
        %281 = vmatprep.subr.mxu0 0.0
        %282 = vmatpush1.msra.mxu0 0.0
        %283 = vmatprep.subr.mxu0 0.0
        %284 = vmatpush1.msra.mxu0 0.0
        %285 = vmatprep.subr.mxu0 0.0
        %286 = vmatpush1.msra.mxu0 0.0
        %287 = vmatprep.subr.mxu0 0.0
        %288 = vmatpush1.msra.mxu0 0.0
        %289 = vmatprep.subr.mxu0 0.0
        %290 = vmatpush1.msra.mxu0 0.0
        %291 = vmatprep.subr.mxu0 0.0
        %292 = vmatpush1.msra.mxu0 0.0
        %293 = vmatprep.subr.mxu0 0.0
        %294 = vmatpush1.msra.mxu0 0.0
        %295 = vmatprep.subr.mxu0 0.0
        %296 = vmatpush1.msra.mxu0 0.0
        %297 = vmatprep.subr.mxu0 0.0
        %298 = vmatpush1.msra.mxu0 0.0
        %299 = vmatprep.subr.mxu0 0.0
        %300 = vmatpush1.msra.mxu0 0.0
        %301 = vmatprep.mubr.f32.mxu0 0.0
        %302 = vmatmul.mubr.f32.gmra.mrb[0].mxu0 %v206
        %v303 = vpop.f32.mrb[0].mxu0
        %v304 = vadd.f32 %v235, %v303
        %v305 = vpop.f32.mrb[0].mxu0
        %306 = vmatprep.mubr.f32.mxu0 0.0
        %307 = vmatmul.mubr.f32.gmra.mrb[0].mxu0 %v207
        %v308 = vpop.f32.mrb[0].mxu0
        %v309 = vadd.f32 %v235, %v308
        %v310 = vpop.f32.mrb[0].mxu0
        %311 = vmatprep.mubr.f32.mxu0 0.0
        %312 = vmatmul.mubr.f32.gmra.mrb[0].mxu0 %v208
        %v313 = vpop.f32.mrb[0].mxu0
        %v314 = vadd.f32 %v235, %v313
        %v315 = vpop.f32.mrb[0].mxu0
        %316 = vmatprep.mubr.f32.mxu0 0.0
        %317 = vmatmul.mubr.f32.gmra.mrb[0].mxu0 %v209
        %v318 = vpop.f32.mrb[0].mxu0
        %v319 = vadd.f32 %v235, %v318
        %v320 = vpop.f32.mrb[0].mxu0
        %321 = vmatprep.mubr.f32.mxu0 0.0
        %322 = vmatmul.mubr.f32.gmra.mrb[0].mxu0 %v210
        %v323 = vpop.f32.mrb[0].mxu0
        %v324 = vadd.f32 %v235, %v323
        %v325 = vpop.f32.mrb[0].mxu0
        %326 = vmatprep.mubr.f32.mxu0 0.0
        %327 = vmatmul.mubr.f32.gmra.mrb[0].mxu0 %v211
        %v328 = vpop.f32.mrb[0].mxu0
        %v329 = vadd.f32 %v235, %v328
        %v330 = vpop.f32.mrb[0].mxu0
        %331 = vmatprep.mubr.f32.mxu0 0.0
        %332 = vmatmul.mubr.f32.gmra.mrb[0].mxu0 %v212
        %v333 = vpop.f32.mrb[0].mxu0
        %v334 = vadd.f32 %v235, %v333
        %v335 = vpop.f32.mrb[0].mxu0
        %336 = vmatprep.mubr.f32.mxu0 0.0
        %337 = vmatmul.mubr.f32.gmra.mrb[0].mxu0 %v213
        %v338 = vpop.f32.mrb[0].mxu0
        %v339 = vadd.f32 %v235, %v338
        %v340 = vpop.f32.mrb[0].mxu0
        %341 = vdwg.mxu0
        %v342 = vmul.f32 %v304, 0.5
        %v343 = vmul.f32 %v309, 0.5
        %v344 = vmul.f32 %v314, 0.5
        %v345 = vmul.f32 %v319, 0.5
        %v346 = vmul.f32 %v324, 0.5
        %v347 = vmul.f32 %v329, 0.5
        %v348 = vmul.f32 %v334, 0.5
        %v349 = vmul.f32 %v339, 0.5
        %v350 = vtanh.pop %v342
        %v351 = vtanh.pop %v343
        %v352 = vtanh.pop %v344
        %v353 = vtanh.pop %v345
        %v354 = vtanh.pop %v346
        %v355 = vtanh.pop %v347
        %v356 = vtanh.pop %v348
        %v357 = vtanh.pop %v349
        %v358 = vadd.f32 %v350, 1.0
        %v359 = vadd.f32 %v351, 1.0
        %v360 = vadd.f32 %v352, 1.0
        %v361 = vadd.f32 %v353, 1.0
        %v362 = vadd.f32 %v354, 1.0
        %v363 = vadd.f32 %v355, 1.0
        %v364 = vadd.f32 %v356, 1.0
        %v365 = vadd.f32 %v357, 1.0
        %v366 = vmul.f32 %v358, 0.5
        %v367 = vmul.f32 %v359, 0.5
        %v368 = vmul.f32 %v360, 0.5
        %v369 = vmul.f32 %v361, 0.5
        %v370 = vmul.f32 %v362, 0.5
        %v371 = vmul.f32 %v363, 0.5
        %v372 = vmul.f32 %v364, 0.5
        %v373 = vmul.f32 %v365, 0.5
        %v374 = vpack.c.bf16 %v367, %v366
        %v375 = vpack.c.bf16 %v369, %v368
        %v376 = vpack.c.bf16 %v371, %v370
        %v377 = vpack.c.bf16 %v373, %v372
        %v382 = vunpack.c.l.b16 %v374
        %v383 = vunpack.c.h.b16 %v374
        %v384 = vunpack.c.l.b16 %v375
        %v385 = vunpack.c.h.b16 %v375
        %v386 = vunpack.c.l.b16 %v376
        %v387 = vunpack.c.h.b16 %v376
        %v388 = vunpack.c.l.b16 %v377
        %v389 = vunpack.c.h.b16 %v377
        %v390 = vpack.c.b16 %v382, %v382
        %v391 = vpack.c.b16 %v383, %v383
        %v392 = vpack.c.b16 %v384, %v384
        %v393 = vpack.c.b16 %v385, %v385
        %v394 = vpack.c.b16 %v386, %v386
        %v395 = vpack.c.b16 %v387, %v387
        %v396 = vpack.c.b16 %v388, %v388
        %v397 = vpack.c.b16 %v389, %v389
        %406 = vst [vmem:[%s203] sm:$0xf] %v390
        %407 = vst [vmem:[%s203 + $0x4] sm:$0xf] %v391
        %408 = vst [vmem:[%s203 + $0x8] sm:$0xf] %v392
        %409 = vst [vmem:[%s203 + $0xc] sm:$0xf] %v393
        %410 = vst [vmem:[%s203 + $0x10] sm:$0xf] %v394
        %411 = vst [vmem:[%s203 + $0x14] sm:$0xf] %v395
        %412 = vst [vmem:[%s203 + $0x18] sm:$0xf] %v396
        %413 = vst [vmem:[%s203 + $0x1c] sm:$0xf] %v397
        %s414 = sand.u32 %s97, 1
        %s415 = scalar_lea.sflag [#allocation4], %s414
        %s416 = sand.u32 %s97, 1
        %s417 = smul.addr %s416, 32
        %s418 = scalar_lea.vmem [#allocation7], %s417
        // Predicated region
        $region41: #{tpu_custom_call.1} parent=31 // pred_check
          %p419 = pneg %p107
        $region42: #{tpu_custom_call.1} parent=31 // pred_check_branch
          %421 = sbr.rel (%p419) target = $region44
        $region43: #{tpu_custom_call.1} parent=31 // pred_region
          %s422 = smul.u32 8, %s21
          %s424 = ssub.s32 512, 512
          %425 = vsyncadd %s415, %s424
          %s426 = smul.addr %s422, 64
          %s427 = scalar_lea.hbm %s3, %s426
          %s428 = sshll.u32 %s418, 4
          %s429 = int_to_ptr.vmem [resolvable:$true] %s428
          %434 = dma.vmem_to_hbm [thread:$0]  %s429, 512, %s427, %s415, 64, 64, 4
        $region44: #{tpu_custom_call.1} parent=31 // pred_fallthru
          _
      $region32: #{tpu_custom_call.1} parent=5 // pred_fallthru
        _
      %p435 = scmp.le.s32.totalorder 2, %s16
      // Predicated region
      $region45: #{tpu_custom_call.1} parent=5 // pred_check
        %p436 = pneg %p435
      $region46: #{tpu_custom_call.1} parent=5 // pred_check_branch
        %438 = sbr.rel (%p436) target = $region48
      $region47: #{tpu_custom_call.1} parent=5 // pred_region
        %s439 = ssub.s32 %s16, 2
        // Predicated region
        $region49: #{tpu_custom_call.1} parent=47 // pred_check
          %p440 = pneg %p113
        $region50: #{tpu_custom_call.1} parent=47 // pred_check_branch
          %442 = sbr.rel (%p440) target = $region52
        $region51: #{tpu_custom_call.1} parent=47 // pred_region
          %s443 = sand.u32 %s98, 1
          %s444 = scalar_lea.sflag [#allocation4], %s443
          %s445 = sand.u32 %s98, 1
          %s446 = smul.addr %s445, 32
          %s447 = scalar_lea.vmem [#allocation7], %s446
          %448 = dma.done %s444, 512
        $region52: #{tpu_custom_call.1} parent=47 // pred_fallthru
          _
      $region48: #{tpu_custom_call.1} parent=5 // pred_fallthru
        _
    $region6: #{tpu_custom_call.1} parent=1 // loop_footer
      %s20 = sadd.s32 1, %s16
    $region7: #{tpu_custom_call.1} parent=1 // loop_footer_branch
      %15 = sbr.rel target = $region3
    $region8: #{tpu_custom_call.1} parent=1 // loop_exit
      _
    %449 = vsyncpa [#allocation3], 1
    %s450 = scalar_lea.sflag [#allocation3], 1
    %451 = vsyncpa %s450, 1
    %452 = vsyncpa [#allocation6], 1
    %453 = vsyncpa [#allocation4], 1
    %s454 = scalar_lea.sflag [#allocation4], 1
    %455 = vsyncpa %s454, 1

</llo_original>
